<compile_context>
chip_gen: v6e
topology: v6e:2x2x1
jax: 0.10.0
libtpu: 0.0.40
codegen_flags: <defaults>
</compile_context>

<pallas_src>
import math
import functools

import jax
import jax.numpy as jnp
from jax.experimental import pallas as pl
from jax.experimental.pallas import tpu as pltpu

_SQRT2 = math.sqrt(2.0)  # Python float: folded in-kernel, no backend init at import.


def _mp_fourier_kernel(x_ref, freqs_ref, phases_ref, o_ref):
    # x_ref:      (1, 1, TB) float32  -- x tile, lane-dense
    # freqs_ref:  (1, C)     float32  -- constant block, DMA'd once
    # phases_ref: (1, C)     float32  -- constant block, DMA'd once
    # o_ref:      (TB, C)    output dtype (== input dtype)
    x_row = x_ref[0]                              # (1, TB) f32
    x_col = jnp.transpose(x_row, (1, 0))          # (TB, 1) lanes->sublanes on the idle XLU
    y = x_col * freqs_ref[...] + phases_ref[...]  # broadcasted outer product -> (TB, C)
    y = jnp.cos(y) * _SQRT2                       # f32 transcendental + scale
    o_ref[...] = y.astype(o_ref.dtype)


def _round_up(a, b):
    return ((a + b - 1) // b) * b


def _sublane_quantum(dtype) -> int:
    size = jnp.dtype(dtype).itemsize
    if size >= 4:
        return 8
    if size == 2:
        return 16
    return 32


@functools.partial(jax.jit, static_argnames=("block_b",))
def mp_fourier(x, freqs, phases, block_b=None):
    """Pallas MPFourier forward.

    Args:
      x:       (B,)  any float dtype (compute in f32, output matches x.dtype)
      freqs:   (C,)  float buffer
      phases:  (C,)  float buffer
      block_b: optional override for the B tile size (rounded to the sublane
               quantum of the output dtype).
    Returns:
      (B, C) array with dtype == x.dtype
    """
    B = x.shape[0]
    C = freqs.shape[0]
    out_dtype = x.dtype
    out_size = jnp.dtype(out_dtype).itemsize
    sub = _sublane_quantum(out_dtype)

    # --- Tile size: ~4 MiB of output per grid step, TB a multiple of the sublane
    # quantum, capped at 4096 rows.  Keep >= 2 grid steps when B allows it so
    # the "parallel" axis can shard across v7x's 2 TensorCores.
    C_lanes = _round_up(C, 128)  # internal lane footprint used only for the budget
    tb = max(sub, (4 << 20) // (C_lanes * out_size))
    if block_b is not None:
        tb = block_b
    tb = min(tb, 4096, _round_up(B, sub))
    if _round_up(B, sub) >= 2 * sub:
        tb = min(tb, _round_up(pl.cdiv(B, 2), sub))
    TB = max(sub, _round_up(tb, sub))

    G = pl.cdiv(B, TB)  # last output block is clipped at B by Pallas (no slice pass)

    # --- Lane-dense x tiles: (G, 1, TB) f32.  Padding rows compute garbage that
    # falls outside the clipped output block, so it is never stored.
    x_pad = jnp.zeros((G * TB,), jnp.float32).at[:B].set(x.astype(jnp.float32))
    x3 = x_pad.reshape(G, 1, TB)
    f2 = freqs.astype(jnp.float32).reshape(1, C)
    p2 = phases.astype(jnp.float32).reshape(1, C)

    cost = pl.CostEstimate(
        flops=3 * B * C,                 # mul + add + sqrt(2) scale per element
        transcendentals=B * C,           # one cosine per element
        bytes_accessed=(x3.size + f2.size + p2.size) * 4 + B * C * out_size,
    )

    out = pl.pallas_call(
        _mp_fourier_kernel,
        out_shape=jax.ShapeDtypeStruct((B, C), out_dtype),
        grid=(G,),
        in_specs=[
            pl.BlockSpec((1, 1, TB), lambda i: (i, 0, 0)),  # x tile, lane-dense read
            pl.BlockSpec((1, C), lambda i: (0, 0)),         # freqs: constant block
            pl.BlockSpec((1, C), lambda i: (0, 0)),         # phases: constant block
        ],
        out_specs=pl.BlockSpec((TB, C), lambda i: (i, 0)),  # exact C (full extent)
        compiler_params=pltpu.CompilerParams(
            dimension_semantics=("parallel",),   # v7x: shard B tiles across 2 TCs
            vmem_limit_bytes=48 * 1024 * 1024,   # comfortable on v5e/v6e/v7x
        ),
        cost_estimate=cost,
    )(x3, f2, p2)

    return out


def mp_fourier_ref(x, freqs, phases):
    y = x.astype(jnp.float32)
    y = jnp.outer(y, freqs.astype(jnp.float32))
    y = y + phases.astype(jnp.float32)
    y = jnp.cos(y) * jnp.float32(math.sqrt(2.0))
    return y.astype(x.dtype)


if __name__ == "__main__":
    key = jax.random.PRNGKey(0)
    k_x, k_f, k_p, k_x2 = jax.random.split(key, 4)

    # --- Small demo shape matching the module (batch of timesteps, C channels) ---
    B = 8            # batch of conditioning scalars (e.g. noise levels)
    C = 32           # num_channels

    # Deterministic "buffers" mirroring MPFourier.__init__:
    #   freqs  = 2*pi * randn(C)
    #   phases = 2*pi * rand(C)
    freqs = 2.0 * math.pi * jax.random.normal(k_f, (C,), dtype=jnp.float32)
    phases = 2.0 * math.pi * jax.random.uniform(k_p, (C,), dtype=jnp.float32)

    x = jax.random.normal(k_x, (B,), dtype=jnp.float32)

    out = mp_fourier(x, freqs, phases)
    out = jax.block_until_ready(out)
    ref = mp_fourier_ref(x, freqs, phases)
    assert out.shape == (B, C), out.shape
    assert out.dtype == x.dtype, out.dtype
    assert jnp.allclose(out, ref, atol=1e-5, rtol=1e-5), "f32 mismatch vs reference"

    # --- Second check: multi-tile grid, ragged B (not a multiple of TB), C not a
    #     multiple of 128 (partially masked stores), bf16 output dtype. ---
    B2, C2 = 200, 192
    k_f2, k_p2 = jax.random.split(k_p, 2)
    freqs2 = 2.0 * math.pi * jax.random.normal(k_f2, (C2,), dtype=jnp.float32)
    phases2 = 2.0 * math.pi * jax.random.uniform(k_p2, (C2,), dtype=jnp.float32)
    x_bf16 = jax.random.normal(k_x2, (B2,), dtype=jnp.float32).astype(jnp.bfloat16)

    out2 = mp_fourier(x_bf16, freqs2, phases2, block_b=64)  # 4 B-tiles, last one ragged
    out2 = jax.block_until_ready(out2)
    ref2 = mp_fourier_ref(x_bf16, freqs2, phases2)
    assert out2.shape == (B2, C2), out2.shape
    assert out2.dtype == jnp.bfloat16, out2.dtype
    assert jnp.allclose(out2.astype(jnp.float32), ref2.astype(jnp.float32),
                        atol=2e-2, rtol=2e-2), "bf16 mismatch vs reference"

    print("KERNEL_OK")
</pallas_src>

<mosaic_0001>
module attributes {stable_mosaic.version = 11 : i64} {
  func.func @_mp_fourier_kernel(%arg0: i32, %arg1: memref<1x1x8xf32, #tpu.memory_space<vmem>>, %arg2: memref<1x32xf32, #tpu.memory_space<vmem>>, %arg3: memref<1x32xf32, #tpu.memory_space<vmem>>, %arg4: memref<8x32xf32, #tpu.memory_space<vmem>>) attributes {dimension_semantics = [#tpu.dimension_semantics<parallel>], iteration_bounds = array<i64: 1>, scalar_prefetch = 0 : i64, scratch_operands = 0 : i64, tpu.core_type = #tpu.core_type<tc>, window_params = [{transform_indices = @transform_0, window_bounds = array<i64: 1, 1, 8>}, {pipeline_mode = #tpu.pipeline_mode<synchronous>, transform_indices = @transform_1, window_bounds = array<i64: 1, 32>}, {pipeline_mode = #tpu.pipeline_mode<synchronous>, transform_indices = @transform_2, window_bounds = array<i64: 1, 32>}, {transform_indices = @transform_3, window_bounds = array<i64: 8, 32>}]} {
    %c0 = arith.constant 0 : index
    %c0_0 = arith.constant 0 : index
    %c0_1 = arith.constant 0 : index
    %0 = vector.load %arg1[%c0, %c0_0, %c0_1] : memref<1x1x8xf32, #tpu.memory_space<vmem>>, vector<1x1x8xf32>
    %1 = vector.shape_cast %0 : vector<1x1x8xf32> to vector<1x8xf32>
    %2 = tpu.transpose %1, [1, 0] : vector<1x8xf32> -> vector<8x1xf32>
    %c0_2 = arith.constant 0 : index
    %c0_3 = arith.constant 0 : index
    %3 = vector.load %arg2[%c0_2, %c0_3] : memref<1x32xf32, #tpu.memory_space<vmem>>, vector<1x32xf32>
    %4 = vector.broadcast %2 : vector<8x1xf32> to vector<8x32xf32>
    %5 = vector.broadcast %3 : vector<1x32xf32> to vector<8x32xf32>
    %6 = arith.mulf %4, %5 : vector<8x32xf32>
    %c0_4 = arith.constant 0 : index
    %c0_5 = arith.constant 0 : index
    %7 = vector.load %arg3[%c0_4, %c0_5] : memref<1x32xf32, #tpu.memory_space<vmem>>, vector<1x32xf32>
    %8 = vector.broadcast %7 : vector<1x32xf32> to vector<8x32xf32>
    %9 = arith.addf %6, %8 : vector<8x32xf32>
    %10 = math.cos %9 : vector<8x32xf32>
    %cst = arith.constant 1.41421354 : f32
    %11 = vector.broadcast %cst : f32 to vector<8x32xf32>
    %12 = arith.mulf %10, %11 : vector<8x32xf32>
    %c0_6 = arith.constant 0 : index
    %c0_7 = arith.constant 0 : index
    %13 = vector.load %arg4[%c0_6, %c0_7] : memref<8x32xf32, #tpu.memory_space<vmem>>, vector<8x32xf32>
    tpu.vector_store %arg4[%c0_6, %c0_7], %12 {strides = array<i32>} : memref<8x32xf32, #tpu.memory_space<vmem>>, vector<8x32xf32>,
    return
  }
  func.func @transform_0(%arg0: i32) -> (i32, i32, i32) {
    %c0_i32 = arith.constant 0 : i32
    %c0_i32_0 = arith.constant 0 : i32
    %c0_i32_1 = arith.constant 0 : i32
    return %arg0, %c0_i32, %c0_i32_0 : i32, i32, i32
  }
  func.func @transform_1(%arg0: i32) -> (i32, i32) {
    %c0_i32 = arith.constant 0 : i32
    %c0_i32_0 = arith.constant 0 : i32
    %c0_i32_1 = arith.constant 0 : i32
    return %c0_i32, %c0_i32_0 : i32, i32
  }
  func.func @transform_2(%arg0: i32) -> (i32, i32) {
    %c0_i32 = arith.constant 0 : i32
    %c0_i32_0 = arith.constant 0 : i32
    %c0_i32_1 = arith.constant 0 : i32
    return %c0_i32, %c0_i32_0 : i32, i32
  }
  func.func @transform_3(%arg0: i32) -> (i32, i32) {
    %c0_i32 = arith.constant 0 : i32
    %c0_i32_0 = arith.constant 0 : i32
    return %arg0, %c0_i32 : i32, i32
  }
}

</mosaic_0001>

<llo_original>
// kernel: mp_fourier.1
$region0: #{mp_fourier.1}
  #allocation0 [shape = 'u32[]', space=smem, size = 0x4, offset = 0x4, fixed_abs, tag = 'smem constant byte address 0x4 - core index']
  #allocation1 [shape = 'u32[144,128]{1,0:T(1,128)}', space=vmem, size = 0x12000, scoped, tag = 'internal scratch']
  %s0 = inlined_call_operand.vmem [shape: f32[1,1,8], index: 0, kind: input, shape index: {}]
  %s1 = inlined_call_operand.vmem [shape: f32[1,32], index: 1, kind: input, shape index: {}]
  %s2 = inlined_call_operand.vmem [shape: f32[1,32], index: 2, kind: input, shape index: {}]
  %s3 = inlined_call_operand.hbm [shape: f32[8,32], index: 3, kind: output, shape index: {}]
  %s4 = sld [smem:[#allocation0]]
  $region22: #{mp_fourier.1} parent=0
    _
  %s6 = ssub.s32 1, %s4
  %s7 = scalar_select 0, %s6, %s4
  $region1: #{mp_fourier.1} parent=0
    #allocation2 [shape = 'u8[4096]{0}', space=vmem, size = 0x1000, scoped, tag = 'output window, operand 0, single buffered']
    #allocation3 [shape = 's32[1]{0}', space=sflag, size = 0x4, scoped, tag = 'scoped memory for mp_fourier.1']
    %8 = vsyncpa [#allocation3], 0
    // Predicated region
    $region2: #{mp_fourier.1} parent=1 // pred_check
      _
    $region3: #{mp_fourier.1} parent=1 // pred_check_branch
      %10 = sbr.rel (0) target = $region5
    $region4: #{mp_fourier.1} parent=1 // pred_region
      _
    $region5: #{mp_fourier.1} parent=1 // pred_fallthru
      _
    // Predicated region
    $region6: #{mp_fourier.1} parent=1 // pred_check
      _
    $region7: #{mp_fourier.1} parent=1 // pred_check_branch
      %12 = sbr.rel (0) target = $region9
    $region8: #{mp_fourier.1} parent=1 // pred_region
      _
    $region9: #{mp_fourier.1} parent=1 // pred_fallthru
      _
    // Predicated region
    $region10: #{mp_fourier.1} parent=1 // pred_check
      _
    $region11: #{mp_fourier.1} parent=1 // pred_check_branch
      %14 = sbr.rel (0) target = $region13
    $region12: #{mp_fourier.1} parent=1 // pred_region
      _
    $region13: #{mp_fourier.1} parent=1 // pred_fallthru
      _
    %v15 = vld [vmem:[%s0] sm:$0x1]
    %16 = vxpose.xlu0.b32.start [1/16] %v15, 128
    %17 = vxpose.xlu0.b32.cont [2/16] 0.0, 128
    %18 = vxpose.xlu0.b32.cont [3/16] 0.0, 128
    %19 = vxpose.xlu0.b32.cont [4/16] 0.0, 128
    %20 = vxpose.xlu0.b32.cont [5/16] 0.0, 128
    %21 = vxpose.xlu0.b32.cont [6/16] 0.0, 128
    %22 = vxpose.xlu0.b32.cont [7/16] 0.0, 128
    %23 = vxpose.xlu0.b32.cont [8/16] 0.0, 128
    %24 = vxpose.xlu0.b32.cont [9/16] 0.0, 128
    %25 = vxpose.xlu0.b32.cont [10/16] 0.0, 128
    %26 = vxpose.xlu0.b32.cont [11/16] 0.0, 128
    %27 = vxpose.xlu0.b32.cont [12/16] 0.0, 128
    %28 = vxpose.xlu0.b32.cont [13/16] 0.0, 128
    %29 = vxpose.xlu0.b32.cont [14/16] 0.0, 128
    %30 = vxpose.xlu0.b32.cont [15/16] 0.0, 128
    %31 = vxpose.xlu0.b32.end [16/16] 0.0, 128
    %v32 = vpop.trf.xlu0
    %v33 = vpop.trf.xlu0
    %v34 = vpop.trf.xlu0
    %v35 = vpop.trf.xlu0
    %v36 = vpop.trf.xlu0
    %v37 = vpop.trf.xlu0
    %v38 = vpop.trf.xlu0
    %v39 = vpop.trf.xlu0
    %v40 = vpop.trf.xlu0
    %v41 = vpop.trf.xlu0
    %v42 = vpop.trf.xlu0
    %v43 = vpop.trf.xlu0
    %v44 = vpop.trf.xlu0
    %v45 = vpop.trf.xlu0
    %v46 = vpop.trf.xlu0
    %v47 = vpop.trf.xlu0
    %v48 = vld [vmem:[%s1] sm:$0x1]
    %50 = vset.pattern.permute.xlu0 0
    %51 = vperm.xlu0 %50, %v32
    %v52 = vpop.permute.xlu0 %51
    %v55 = vlaneseq
    %v56 = vshrl.u32 %v55, 7
    %v57 = vsub.s32 0, %v56
    %v58 = vrot.slane %v48, %v57
    %v60 = vmul.f32 %v52, %v58
    %v61 = vld [vmem:[%s2] sm:$0x1]
    %v63 = vlaneseq
    %v64 = vshrl.u32 %v63, 7
    %v65 = vsub.s32 0, %v64
    %v66 = vrot.slane %v61, %v65
    %v68 = vadd.f32 %v60, %v66
    %v69 = vand.u32 2147483647, %v68
    %vm70 = vcmp.le.f32.partialorder %v69, 0.7853982
    %vm71 = vcmp.lt.s32.totalorder %v68, 0
    %v72 = vand.u32 %v68, 2139095040
    %v73 = vshrl.u32 %v72, 23
    %v74 = vsub.s32 %v73, 127
    %v75 = vand.u32 2147483647, %v68
    %v76 = vand.u32 %v75, 8388607
    %v77 = vor.u32 %v76, 8388608
    %v78 = vsub.s32 0, %v77
    %v79 = vadd.s32 %v74, 1
    %vm80 = vcmp.gt.s32.totalorder %v79, 0
    %v81 = vsel %vm80, %v79, 0
    %v82 = vshrl.u32 %v81, 5
    %v83 = vand.u32 %v81, 31
    %v84 = vsub.s32 32, %v83
    %v85 = vshrl.u32 683565275, %v84
    %v86 = vshll.u32 683565275, %v83
    %v87 = vshrl.u32 2475754826, %v84
    %v88 = vor.u32 %v86, %v87
    %v89 = vshll.u32 2475754826, %v83
    %v90 = vshrl.u32 2131351028, %v84
    %v91 = vor.u32 %v89, %v90
    %v92 = vshll.u32 2131351028, %v83
    %v93 = vshrl.u32 2102212464, %v84
    %v94 = vor.u32 %v92, %v93
    %v95 = vshll.u32 2102212464, %v83
    %v96 = vshrl.u32 920167782, %v84
    %v97 = vor.u32 %v95, %v96
    %v98 = vshll.u32 920167782, %v83
    %v99 = vshrl.u32 1326507024, %v84
    %v100 = vor.u32 %v98, %v99
    %vm101 = vcmp.lt.s32.totalorder %v82, 1
    %vm102 = vcmp.lt.s32.totalorder %v82, 2
    %vm103 = vcmp.lt.s32.totalorder %v82, 3
    %vm104 = vcmp.lt.s32.totalorder %v82, 4
    %v105 = vsel %vm101, %v85, %v88
    %v106 = vsel %vm104, %v94, 2102212464
    %v107 = vsel %vm103, %v91, %v106
    %v108 = vsel %vm102, %v105, %v107
    %v109 = vsel %vm101, %v88, %v91
    %v110 = vsel %vm104, %v97, 920167782
    %v111 = vsel %vm103, %v94, %v110
    %v112 = vsel %vm102, %v109, %v111
    %v113 = vsel %vm101, %v91, %v94
    %v114 = vsel %vm104, %v100, 1326507024
    %v115 = vsel %vm103, %v97, %v114
    %v116 = vsel %vm102, %v113, %v115
    %v117 = vshll.u32 %v77, 8
    %v118 = vmul.u32.u64.compose %v117, %v116
    %v119 = vextract.low.u32 %v118
    %v120 = vextract.high.u32 %v118
    %v121 = vmul.u32.u64.compose %v117, %v112
    %v122 = vextract.low.u32 %v121
    %v123 = vextract.high.u32 %v121
    %v124 = vmul.u32 %v117, %v108
    %v125 = vadd.s32 %v120, %v122
    %vm126 = vc.u32 %v120, %v122
    %v127 = vadd.s32 %v123, 1
    %v128 = vsel %vm126, %v127, %v123
    %v129 = vadd.s32 %v124, %v128
    %v130 = vadd.s32 %v129, 536870912
    %v131 = vshrl.u32 %v130, 30
    %v132 = vshll.u32 %v131, 30
    %v133 = vsub.s32 %v129, %v132
    %vm134 = vcmp.lt.s32.totalorder %v133, 0
    %v135 = vsub.s32 0, %v133
    %v136 = vsel %vm134, %v135, %v133
    %v137 = vclz %v136
    %v138 = vsub.s32 %v137, 2
    %vm139 = vcmp.gt.s32.totalorder 0, %v138
    %v140 = vsel %vm139, 0, %v138
    %v141 = vsub.s32 32, %v140
    %v142 = vshll.u32 %v133, %v140
    %v143 = vshrl.u32 %v125, %v141
    %v144 = vor.u32 %v142, %v143
    %v145 = vsub.s32 4294967266, %v140
    %v146 = vadd.s32 %v145, 127
    %v147 = vshll.u32 %v146, 23
    %v148 = vor.u32 4788187, %v147
    %v149 = vand.u32 2147483647, %v148
    %v151 = vcvt.s32.f32 %v144
    %v152 = vmul.f32 %v151, %v149
    %v153 = vxor.u32 %v152, 2147483648
    %v154 = vsel %vm71, %v153, %v152
    %v155 = vsub.s32 4, %v131
    %v156 = vsel %vm71, %v155, %v131
    %v157 = vsel %vm70, %v68, %v154
    %v158 = vsel %vm70, 0, %v156
    %v159 = vcosq.f32.pop %v157
    %v160 = vsinq.f32.pop %v157
    %vm161 = vweird.f32 %v68
    %v162 = vand.u32 %v158, 3
    %vm163 = vcmp.lt.s32.totalorder %v162, 2
    %vm164 = vcmp.eq.s32.totalorder %v162, 0
    %v165 = vxor.u32 %v160, 2147483648
    %v166 = vsel %vm164, %v159, %v165
    %vm167 = vcmp.eq.s32.totalorder %v162, 2
    %v168 = vxor.u32 %v159, 2147483648
    %v169 = vsel %vm167, %v168, %v160
    %v170 = vsel %vm163, %v166, %v169
    %v171 = vsel %vm161, nan, %v170
    %v172 = vmul.f32 %v171, 1.4142135
    %vm173 = vcmask 261120
    %174 = vst.msk [vmem:[#allocation2] sm:$0xff] %vm173, %v172
    // Predicated region
    $region14: #{mp_fourier.1} parent=1 // pred_check
      _
    $region15: #{mp_fourier.1} parent=1 // pred_check_branch
      %176 = sbr.rel (0) target = $region17
    $region16: #{mp_fourier.1} parent=1 // pred_region
      %s178 = ssub.s32 128, 128
      %179 = vsyncadd [#allocation3], %s178
      %s181 = sshll.u32 [#allocation2], 4
      %s182 = int_to_ptr.vmem [resolvable:$true] %s181
      %184 = dma.vmem_to_hbm [thread:$0]  %s182, 128, %s3, [#allocation3]
    $region17: #{mp_fourier.1} parent=1 // pred_fallthru
      _
    // Predicated region
    $region18: #{mp_fourier.1} parent=1 // pred_check
      _
    $region19: #{mp_fourier.1} parent=1 // pred_check_branch
      %186 = sbr.rel (0) target = $region21
    $region20: #{mp_fourier.1} parent=1 // pred_region
      %187 = dma.done [#allocation3], 128
    $region21: #{mp_fourier.1} parent=1 // pred_fallthru
      _
    %188 = vsyncpa [#allocation3], 1

</llo_original>
